<compile_context>
chip_gen: v5e
topology: v5e:2x2
jax: 0.10.0
libtpu: 0.0.40
codegen_flags: <defaults>
</compile_context>

<pallas_src>
import jax
import jax.numpy as jnp
from jax.experimental import pallas as pl
from jax.experimental.pallas import tpu as pltpu


def _round_up(x, m):
    return ((x + m - 1) // m) * m


def _full_model_kernel(x_ref, wc_ref, bc_ref, w1_ref, b1_ref, w2_ref, b2_ref,
                       out_ref, feats_ref, reps_ref):
    # feature_extractor: conv(3x3 over a 3x3 input) == matmul over K=27.
    # Cast f32 -> bf16 in VMEM (free under DMA/MXU slack); f32 MXU accumulation.
    x = x_ref[...].astype(jnp.bfloat16)
    feats = jnp.dot(x, wc_ref[...], preferred_element_type=jnp.float32)
    feats = jnp.maximum(feats + bc_ref[...], 0.0)
    feats_ref[...] = feats.astype(feats_ref.dtype)      # bf16 store: halves dominant writeback

    # rep_manipulator: Linear + ReLU (bf16 operands, f32 accumulation)
    reps = jnp.dot(feats.astype(jnp.bfloat16), w1_ref[...],
                   preferred_element_type=jnp.float32)
    reps = jnp.maximum(reps + b1_ref[...], 0.0)
    reps_ref[...] = reps.astype(reps_ref.dtype)

    # classifier: Linear + ReLU
    out = jnp.dot(reps.astype(jnp.bfloat16), w2_ref[...],
                  preferred_element_type=jnp.float32)
    out = jnp.maximum(out + b2_ref[...], 0.0)
    out_ref[...] = out.astype(out_ref.dtype)


def full_model(x_nchw, params, *, tb_max=8192, target_steps=8):
    """x_nchw: [B, 3, H, W] with (H, W) == conv kernel size (3, 3).

    Returns (output, feats, reps) like the PyTorch FullModel.forward.
    feats is returned in bfloat16 (traffic optimization); output/reps are float32.
    """
    wc, bc, w1, b1, w2, b2 = params
    B, C, H, W = x_nchw.shape
    kdim = C * H * W                    # 27
    filters = wc.shape[1]               # 128
    rep_dim = w1.shape[1]               # 32
    out_dim = w2.shape[1]               # 32

    # im2col flatten in (c, kh, kw) order (matches the PyTorch conv-weight reshape).
    # reshape of a contiguous array is metadata-only: no HBM copy, kernel reads the f32 directly.
    x_flat = x_nchw.reshape(B, kdim)

    # Batch tile: multiple of 8 sublanes; aim for >= target_steps grid steps so v7x's two
    # TensorCores both get work and the 2-deep pipeline has something to overlap; cap TB so the
    # double-buffered working set stays well under v7x's 64 MiB VMEM.
    TB = min(tb_max, max(8, _round_up(pl.cdiv(B, target_steps), 8)))
    grid = (pl.cdiv(B, TB),)            # ragged last block: padded reads, masked writes

    wc_b = wc.astype(jnp.bfloat16)      # (kdim, filters)
    w1_b = w1.astype(jnp.bfloat16)
    w2_b = w2.astype(jnp.bfloat16)
    bc_f = bc.astype(jnp.float32)
    b1_f = b1.astype(jnp.float32)
    b2_f = b2.astype(jnp.float32)

    def row_spec(shape):
        return pl.BlockSpec(shape, lambda i: (i, 0))

    def full_spec(shape):
        return pl.BlockSpec(shape, lambda i: (0, 0))

    flops = 2 * B * (kdim * filters + filters * rep_dim + rep_dim * out_dim)
    bytes_accessed = (B * kdim * 4                                         # x read (f32)
                      + B * filters * 2                                    # feats write (bf16)
                      + B * (rep_dim + out_dim) * 4                        # reps + out writes (f32)
                      + (kdim * filters + filters * rep_dim + rep_dim * out_dim) * 2
                      + (filters + rep_dim + out_dim) * 4)                 # weights + biases

    out, feats, reps = pl.pallas_call(
        _full_model_kernel,
        grid=grid,
        in_specs=[
            row_spec((TB, kdim)),           # x tile (f32, streamed, double-buffered)
            full_spec((kdim, filters)),     # conv weight (as matmul), bf16
            full_spec((1, filters)),        # conv bias
            full_spec((filters, rep_dim)),  # fc1 weight
            full_spec((1, rep_dim)),        # fc1 bias
            full_spec((rep_dim, out_dim)),  # fc2 weight
            full_spec((1, out_dim)),        # fc2 bias
        ],
        out_specs=(
            row_spec((TB, out_dim)),        # output
            row_spec((TB, filters)),        # feats (bf16)
            row_spec((TB, rep_dim)),        # reps
        ),
        out_shape=(
            jax.ShapeDtypeStruct((B, out_dim), jnp.float32),
            jax.ShapeDtypeStruct((B, filters), jnp.bfloat16),
            jax.ShapeDtypeStruct((B, rep_dim), jnp.float32),
        ),
        compiler_params=pltpu.CompilerParams(
            dimension_semantics=("parallel",),
            vmem_limit_bytes=32 * 1024 * 1024,
        ),
        cost_estimate=pl.CostEstimate(
            flops=flops, transcendentals=0, bytes_accessed=bytes_accessed),
    )(x_flat, wc_b, bc_f, w1_b, b1_f, w2_b, b2_f)

    return out, feats, reps


def init_params(key, filters=128, output_dim=32, H=3, W=3, in_ch=3):
    """Deterministic synthetic parameters (shapes match the PyTorch submodules)."""
    k = jax.random.split(key, 6)
    kdim = in_ch * H * W
    # conv1 weight: (filters, in_ch, H, W) in torch -> (kdim, filters) for the matmul form
    wc = (jax.random.normal(k[0], (filters, in_ch, H, W), jnp.float32) * 0.05)
    wc = wc.reshape(filters, kdim).T                        # (kdim, filters)
    bc = jax.random.normal(k[1], (1, filters), jnp.float32) * 0.05
    # torch Linear weight is (out, in) -> stored transposed (in, out)
    w1 = jax.random.normal(k[2], (filters, output_dim), jnp.float32) * 0.05
    b1 = jax.random.normal(k[3], (1, output_dim), jnp.float32) * 0.05
    w2 = jax.random.normal(k[4], (output_dim, output_dim), jnp.float32) * 0.05
    b2 = jax.random.normal(k[5], (1, output_dim), jnp.float32) * 0.05
    return wc, bc, w1, b1, w2, b2


if __name__ == "__main__":
    key = jax.random.PRNGKey(0)
    kx, kp = jax.random.split(key)

    B, C, H, W = 6, 3, 3, 3          # B=6 exercises the ragged (masked) last-block path
    filters, output_dim = 128, 32

    x = jax.random.normal(kx, (B, C, H, W), jnp.float32)
    params = init_params(kp, filters=filters, output_dim=output_dim, H=H, W=W, in_ch=C)

    out, feats, reps = full_model(x, params)
    jax.block_until_ready((out, feats, reps))

    # Pure-JAX f32 reference (same math as the PyTorch forward). The kernel uses bf16 operands
    # with f32 accumulation and a bf16 feats store, so the tolerance is loosened accordingly.
    wc, bc, w1, b1, w2, b2 = params
    feats_ref = jnp.maximum(x.reshape(B, -1) @ wc + bc, 0.0)
    reps_ref = jnp.maximum(feats_ref @ w1 + b1, 0.0)
    out_ref = jnp.maximum(reps_ref @ w2 + b2, 0.0)

    assert out.shape == (B, output_dim)
    assert feats.shape == (B, filters)
    assert reps.shape == (B, output_dim)
    assert jnp.allclose(feats.astype(jnp.float32), feats_ref, atol=2e-2, rtol=2e-2)
    assert jnp.allclose(reps, reps_ref, atol=2e-2, rtol=2e-2)
    assert jnp.allclose(out, out_ref, atol=2e-2, rtol=2e-2)

    print("KERNEL_OK")
</pallas_src>

<mosaic_0001>
module attributes {stable_mosaic.version = 11 : i64} {
  func.func @_full_model_kernel(%arg0: i32, %arg1: memref<8x27xf32, #tpu.memory_space<vmem>>, %arg2: memref<27x128xbf16, #tpu.memory_space<vmem>>, %arg3: memref<1x128xf32, #tpu.memory_space<vmem>>, %arg4: memref<128x32xbf16, #tpu.memory_space<vmem>>, %arg5: memref<1x32xf32, #tpu.memory_space<vmem>>, %arg6: memref<32x32xbf16, #tpu.memory_space<vmem>>, %arg7: memref<1x32xf32, #tpu.memory_space<vmem>>, %arg8: memref<8x32xf32, #tpu.memory_space<vmem>>, %arg9: memref<8x128xbf16, #tpu.memory_space<vmem>>, %arg10: memref<8x32xf32, #tpu.memory_space<vmem>>) attributes {dimension_semantics = [#tpu.dimension_semantics<parallel>], iteration_bounds = array<i64: 1>, scalar_prefetch = 0 : i64, scratch_operands = 0 : i64, tpu.core_type = #tpu.core_type<tc>, window_params = [{transform_indices = @transform_0, window_bounds = array<i64: 8, 27>}, {pipeline_mode = #tpu.pipeline_mode<synchronous>, transform_indices = @transform_1, window_bounds = array<i64: 27, 128>}, {pipeline_mode = #tpu.pipeline_mode<synchronous>, transform_indices = @transform_2, window_bounds = array<i64: 1, 128>}, {pipeline_mode = #tpu.pipeline_mode<synchronous>, transform_indices = @transform_3, window_bounds = array<i64: 128, 32>}, {pipeline_mode = #tpu.pipeline_mode<synchronous>, transform_indices = @transform_4, window_bounds = array<i64: 1, 32>}, {pipeline_mode = #tpu.pipeline_mode<synchronous>, transform_indices = @transform_5, window_bounds = array<i64: 32, 32>}, {pipeline_mode = #tpu.pipeline_mode<synchronous>, transform_indices = @transform_6, window_bounds = array<i64: 1, 32>}, {transform_indices = @transform_7, window_bounds = array<i64: 8, 32>}, {transform_indices = @transform_8, window_bounds = array<i64: 8, 128>}, {transform_indices = @transform_9, window_bounds = array<i64: 8, 32>}]} {
    %c0 = arith.constant 0 : index
    %c0_0 = arith.constant 0 : index
    %0 = vector.load %arg1[%c0, %c0_0] : memref<8x27xf32, #tpu.memory_space<vmem>>, vector<8x27xf32>
    %1 = arith.truncf %0 : vector<8x27xf32> to vector<8x27xbf16>
    %c0_1 = arith.constant 0 : index
    %c0_2 = arith.constant 0 : index
    %2 = vector.load %arg2[%c0_1, %c0_2] : memref<27x128xbf16, #tpu.memory_space<vmem>>, vector<27x128xbf16>
    %cst = arith.constant dense<0.000000e+00> : vector<8x128xf32>
    %3 = tpu.matmul %1, %2, %cst {dimension_numbers = #tpu.dot_dimension_numbers<[1], [0], [0], [1], [0, 0, 1, 1], [], []>} : vector<8x27xbf16>, vector<27x128xbf16>, vector<8x128xf32> -> vector<8x128xf32>
    %c0_3 = arith.constant 0 : index
    %c0_4 = arith.constant 0 : index
    %4 = vector.load %arg3[%c0_3, %c0_4] : memref<1x128xf32, #tpu.memory_space<vmem>>, vector<1x128xf32>
    %5 = vector.broadcast %4 : vector<1x128xf32> to vector<8x128xf32>
    %6 = arith.addf %3, %5 : vector<8x128xf32>
    %cst_5 = arith.constant 0.000000e+00 : f32
    %7 = vector.broadcast %cst_5 : f32 to vector<8x128xf32>
    %8 = arith.maximumf %6, %7 : vector<8x128xf32>
    %9 = arith.truncf %8 : vector<8x128xf32> to vector<8x128xbf16>
    %c0_6 = arith.constant 0 : index
    %c0_7 = arith.constant 0 : index
    %10 = vector.load %arg9[%c0_6, %c0_7] : memref<8x128xbf16, #tpu.memory_space<vmem>>, vector<8x128xbf16>
    tpu.vector_store %arg9[%c0_6, %c0_7], %9 {strides = array<i32>} : memref<8x128xbf16, #tpu.memory_space<vmem>>, vector<8x128xbf16>,
    %11 = arith.truncf %8 : vector<8x128xf32> to vector<8x128xbf16>
    %c0_8 = arith.constant 0 : index
    %c0_9 = arith.constant 0 : index
    %12 = vector.load %arg4[%c0_8, %c0_9] : memref<128x32xbf16, #tpu.memory_space<vmem>>, vector<128x32xbf16>
    %cst_10 = arith.constant dense<0.000000e+00> : vector<8x32xf32>
    %13 = tpu.matmul %11, %12, %cst_10 {dimension_numbers = #tpu.dot_dimension_numbers<[1], [0], [0], [1], [0, 0, 1, 1], [], []>} : vector<8x128xbf16>, vector<128x32xbf16>, vector<8x32xf32> -> vector<8x32xf32>
    %c0_11 = arith.constant 0 : index
    %c0_12 = arith.constant 0 : index
    %14 = vector.load %arg5[%c0_11, %c0_12] : memref<1x32xf32, #tpu.memory_space<vmem>>, vector<1x32xf32>
    %15 = vector.broadcast %14 : vector<1x32xf32> to vector<8x32xf32>
    %16 = arith.addf %13, %15 : vector<8x32xf32>
    %cst_13 = arith.constant 0.000000e+00 : f32
    %17 = vector.broadcast %cst_13 : f32 to vector<8x32xf32>
    %18 = arith.maximumf %16, %17 : vector<8x32xf32>
    %c0_14 = arith.constant 0 : index
    %c0_15 = arith.constant 0 : index
    %19 = vector.load %arg10[%c0_14, %c0_15] : memref<8x32xf32, #tpu.memory_space<vmem>>, vector<8x32xf32>
    tpu.vector_store %arg10[%c0_14, %c0_15], %18 {strides = array<i32>} : memref<8x32xf32, #tpu.memory_space<vmem>>, vector<8x32xf32>,
    %20 = arith.truncf %18 : vector<8x32xf32> to vector<8x32xbf16>
    %c0_16 = arith.constant 0 : index
    %c0_17 = arith.constant 0 : index
    %21 = vector.load %arg6[%c0_16, %c0_17] : memref<32x32xbf16, #tpu.memory_space<vmem>>, vector<32x32xbf16>
    %cst_18 = arith.constant dense<0.000000e+00> : vector<8x32xf32>
    %22 = tpu.matmul %20, %21, %cst_18 {dimension_numbers = #tpu.dot_dimension_numbers<[1], [0], [0], [1], [0, 0, 1, 1], [], []>} : vector<8x32xbf16>, vector<32x32xbf16>, vector<8x32xf32> -> vector<8x32xf32>
    %c0_19 = arith.constant 0 : index
    %c0_20 = arith.constant 0 : index
    %23 = vector.load %arg7[%c0_19, %c0_20] : memref<1x32xf32, #tpu.memory_space<vmem>>, vector<1x32xf32>
    %24 = vector.broadcast %23 : vector<1x32xf32> to vector<8x32xf32>
    %25 = arith.addf %22, %24 : vector<8x32xf32>
    %cst_21 = arith.constant 0.000000e+00 : f32
    %26 = vector.broadcast %cst_21 : f32 to vector<8x32xf32>
    %27 = arith.maximumf %25, %26 : vector<8x32xf32>
    %c0_22 = arith.constant 0 : index
    %c0_23 = arith.constant 0 : index
    %28 = vector.load %arg8[%c0_22, %c0_23] : memref<8x32xf32, #tpu.memory_space<vmem>>, vector<8x32xf32>
    tpu.vector_store %arg8[%c0_22, %c0_23], %27 {strides = array<i32>} : memref<8x32xf32, #tpu.memory_space<vmem>>, vector<8x32xf32>,
    return
  }
  func.func @transform_0(%arg0: i32) -> (i32, i32) {
    %c0_i32 = arith.constant 0 : i32
    %c0_i32_0 = arith.constant 0 : i32
    return %arg0, %c0_i32 : i32, i32
  }
  func.func @transform_1(%arg0: i32) -> (i32, i32) {
    %c0_i32 = arith.constant 0 : i32
    %c0_i32_0 = arith.constant 0 : i32
    %c0_i32_1 = arith.constant 0 : i32
    return %c0_i32, %c0_i32_0 : i32, i32
  }
  func.func @transform_2(%arg0: i32) -> (i32, i32) {
    %c0_i32 = arith.constant 0 : i32
    %c0_i32_0 = arith.constant 0 : i32
    %c0_i32_1 = arith.constant 0 : i32
    return %c0_i32, %c0_i32_0 : i32, i32
  }
  func.func @transform_3(%arg0: i32) -> (i32, i32) {
    %c0_i32 = arith.constant 0 : i32
    %c0_i32_0 = arith.constant 0 : i32
    %c0_i32_1 = arith.constant 0 : i32
    return %c0_i32, %c0_i32_0 : i32, i32
  }
  func.func @transform_4(%arg0: i32) -> (i32, i32) {
    %c0_i32 = arith.constant 0 : i32
    %c0_i32_0 = arith.constant 0 : i32
    %c0_i32_1 = arith.constant 0 : i32
    return %c0_i32, %c0_i32_0 : i32, i32
  }
  func.func @transform_5(%arg0: i32) -> (i32, i32) {
    %c0_i32 = arith.constant 0 : i32
    %c0_i32_0 = arith.constant 0 : i32
    %c0_i32_1 = arith.constant 0 : i32
    return %c0_i32, %c0_i32_0 : i32, i32
  }
  func.func @transform_6(%arg0: i32) -> (i32, i32) {
    %c0_i32 = arith.constant 0 : i32
    %c0_i32_0 = arith.constant 0 : i32
    %c0_i32_1 = arith.constant 0 : i32
    return %c0_i32, %c0_i32_0 : i32, i32
  }
  func.func @transform_7(%arg0: i32) -> (i32, i32) {
    %c0_i32 = arith.constant 0 : i32
    %c0_i32_0 = arith.constant 0 : i32
    return %arg0, %c0_i32 : i32, i32
  }
  func.func @transform_8(%arg0: i32) -> (i32, i32) {
    %c0_i32 = arith.constant 0 : i32
    %c0_i32_0 = arith.constant 0 : i32
    return %arg0, %c0_i32 : i32, i32
  }
  func.func @transform_9(%arg0: i32) -> (i32, i32) {
    %c0_i32 = arith.constant 0 : i32
    %c0_i32_0 = arith.constant 0 : i32
    return %arg0, %c0_i32 : i32, i32
  }
}

</mosaic_0001>

<llo_original>
// kernel: tpu_custom_call.1
$region0: #{tpu_custom_call.1}
  #allocation0 [shape = 'u32[]', space=smem, size = 0x4, offset = 0x4, fixed_abs, tag = 'smem constant byte address 0x4 - core index']
  #allocation1 [shape = 'u32[72,128]{1,0:T(1,128)}', space=vmem, size = 0x9000, scoped, tag = 'internal scratch']
  %s0 = inlined_call_operand.vmem [shape: f32[6,27], index: 0, kind: input, shape index: {}]
  %s1 = inlined_call_operand.vmem [shape: bf16[27,128], index: 1, kind: input, shape index: {}]
  %s2 = inlined_call_operand.vmem [shape: f32[1,128], index: 2, kind: input, shape index: {}]
  %s3 = inlined_call_operand.vmem [shape: bf16[128,32], index: 3, kind: input, shape index: {}]
  %s4 = inlined_call_operand.vmem [shape: f32[1,32], index: 4, kind: input, shape index: {}]
  %s5 = inlined_call_operand.vmem [shape: bf16[32,32], index: 5, kind: input, shape index: {}]
  %s6 = inlined_call_operand.vmem [shape: f32[1,32], index: 6, kind: input, shape index: {}]
  %s7 = inlined_call_operand.hbm [shape: f32[6,32], index: 7, kind: output, shape index: {0}]
  %s8 = inlined_call_operand.hbm [shape: bf16[6,128], index: 8, kind: output, shape index: {1}]
  %s9 = inlined_call_operand.hbm [shape: f32[6,32], index: 9, kind: output, shape index: {2}]
  %10 = xla_tuple %s7, %s8, %s9
  %s11 = sld [smem:[#allocation0]]
  $region54: #{tpu_custom_call.1} parent=0
    _
  %s13 = ssub.s32 1, %s11
  %s14 = scalar_select 0, %s13, %s11
  $region1: #{tpu_custom_call.1} parent=0
    #allocation2 [shape = 'u8[4096]{0}', space=vmem, size = 0x1000, scoped, tag = 'output window, operand 0, single buffered']
    #allocation3 [shape = 's32[1]{0}', space=sflag, size = 0x4, scoped, tag = 'scoped memory for tpu_custom_call.1']
    #allocation4 [shape = 'u8[2048]{0}', space=vmem, size = 0x800, scoped, tag = 'output window, operand 1, single buffered']
    #allocation5 [shape = 's32[1]{0}', space=sflag, size = 0x4, scoped, tag = 'scoped memory for tpu_custom_call.1']
    #allocation6 [shape = 'u8[4096]{0}', space=vmem, size = 0x1000, scoped, tag = 'output window, operand 2, single buffered']
    %15 = vsyncpa [#allocation3], 0
    %16 = vsyncpa [#allocation5], 0
    // Predicated region
    $region2: #{tpu_custom_call.1} parent=1 // pred_check
      _
    $region3: #{tpu_custom_call.1} parent=1 // pred_check_branch
      %18 = sbr.rel (0) target = $region5
    $region4: #{tpu_custom_call.1} parent=1 // pred_region
      _
    $region5: #{tpu_custom_call.1} parent=1 // pred_fallthru
      _
    // Predicated region
    $region6: #{tpu_custom_call.1} parent=1 // pred_check
      _
    $region7: #{tpu_custom_call.1} parent=1 // pred_check_branch
      %20 = sbr.rel (0) target = $region9
    $region8: #{tpu_custom_call.1} parent=1 // pred_region
      _
    $region9: #{tpu_custom_call.1} parent=1 // pred_fallthru
      _
    // Predicated region
    $region10: #{tpu_custom_call.1} parent=1 // pred_check
      _
    $region11: #{tpu_custom_call.1} parent=1 // pred_check_branch
      %22 = sbr.rel (0) target = $region13
    $region12: #{tpu_custom_call.1} parent=1 // pred_region
      _
    $region13: #{tpu_custom_call.1} parent=1 // pred_fallthru
      _
    // Predicated region
    $region14: #{tpu_custom_call.1} parent=1 // pred_check
      _
    $region15: #{tpu_custom_call.1} parent=1 // pred_check_branch
      %24 = sbr.rel (0) target = $region17
    $region16: #{tpu_custom_call.1} parent=1 // pred_region
      _
    $region17: #{tpu_custom_call.1} parent=1 // pred_fallthru
      _
    // Predicated region
    $region18: #{tpu_custom_call.1} parent=1 // pred_check
      _
    $region19: #{tpu_custom_call.1} parent=1 // pred_check_branch
      %26 = sbr.rel (0) target = $region21
    $region20: #{tpu_custom_call.1} parent=1 // pred_region
      _
    $region21: #{tpu_custom_call.1} parent=1 // pred_fallthru
      _
    // Predicated region
    $region22: #{tpu_custom_call.1} parent=1 // pred_check
      _
    $region23: #{tpu_custom_call.1} parent=1 // pred_check_branch
      %28 = sbr.rel (0) target = $region25
    $region24: #{tpu_custom_call.1} parent=1 // pred_region
      _
    $region25: #{tpu_custom_call.1} parent=1 // pred_fallthru
      _
    // Predicated region
    $region26: #{tpu_custom_call.1} parent=1 // pred_check
      _
    $region27: #{tpu_custom_call.1} parent=1 // pred_check_branch
      %30 = sbr.rel (0) target = $region29
    $region28: #{tpu_custom_call.1} parent=1 // pred_region
      _
    $region29: #{tpu_custom_call.1} parent=1 // pred_fallthru
      _
    %v32 = vld [vmem:[%s0] sm:$0xff]
    %v33 = vpack.c.bf16 %v32, %v32
    %v34 = vld [vmem:[%s1] sm:$0xf]
    %v35 = vld [vmem:[%s1 + $0x4] sm:$0xf]
    %v36 = vld [vmem:[%s1 + $0x8] sm:$0xf]
    %v37 = vld [vmem:[%s1 + $0xc] sm:$0x3]
    %v38 = vld [vmem:[%s2] sm:$0x1]
    %v40 = vperm.slane %v38, 0
    %v46 = vunpack.c.l.b16 %v34
    %v47 = vunpack.c.l.b16 %v35
    %v48 = vunpack.c.l.b16 %v36
    %v49 = vunpack.c.l.b16 %v37
    %v50 = vpack.c.b16 %v47, %v46
    %v51 = vpack.c.b16 %v49, %v48
    %vm53 = vcmask 220160
    %v55 = vsel %vm53, %v33, 0
    %vm57 = vcmask 1044480
    %vm58 = vcmask 1045504
    %v59 = vsel %vm57, 4294967295, 65535
    %v60 = vsel %vm58, %v59, 0
    %v62 = vand.u32 %v51, %v60
    %64 = vmatpush.bf16.msra.mxu0 0
    %65 = vmatpush.bf16.msra.mxu0 0
    %66 = vmatpush.bf16.msra.mxu0 0
    %67 = vmatpush.bf16.msra.mxu0 0
    %68 = vmatpush.bf16.msra.mxu0 0
    %69 = vmatpush.bf16.msra.mxu0 0
    %70 = vmatpush.bf16.msra.mxu0 %v62
    %71 = vmatpush.bf16.msra.mxu0 %v50
    %72 = vmatmul.bf16.gmra.mxu0 %v55
    %v73 = vpop.f32.mrf.mxu0
    %v74 = vadd.f32 %v40, %v73
    %v75 = vpop.f32.mrf.mxu0
    %76 = vdwg.mxu0
    %v77 = vmax.f32 %v74, 0.0
    %v78 = vpack.c.bf16 %v77, %v77
    %79 = vst [vmem:[#allocation4] sm:$0xf] %v78
    %v80 = vld [vmem:[%s3] sm:$0xf]
    %v81 = vld [vmem:[%s3 + $0x4] sm:$0xf]
    %v82 = vld [vmem:[%s3 + $0x8] sm:$0xf]
    %v83 = vld [vmem:[%s3 + $0xc] sm:$0xf]
    %v84 = vld [vmem:[%s3 + $0x10] sm:$0xf]
    %v85 = vld [vmem:[%s3 + $0x14] sm:$0xf]
    %v86 = vld [vmem:[%s3 + $0x18] sm:$0xf]
    %v87 = vld [vmem:[%s3 + $0x1c] sm:$0xf]
    %v88 = vld [vmem:[%s3 + $0x20] sm:$0xf]
    %v89 = vld [vmem:[%s3 + $0x24] sm:$0xf]
    %v90 = vld [vmem:[%s3 + $0x28] sm:$0xf]
    %v91 = vld [vmem:[%s3 + $0x2c] sm:$0xf]
    %v92 = vld [vmem:[%s3 + $0x30] sm:$0xf]
    %v93 = vld [vmem:[%s3 + $0x34] sm:$0xf]
    %v94 = vld [vmem:[%s3 + $0x38] sm:$0xf]
    %v95 = vld [vmem:[%s3 + $0x3c] sm:$0xf]
    %v96 = vld [vmem:[%s4] sm:$0x1]
    %v98 = vperm.slane %v96, 0
    %v116 = vunpack.c.l.b16 %v80
    %v117 = vunpack.c.l.b16 %v81
    %v118 = vunpack.c.l.b16 %v82
    %v119 = vunpack.c.l.b16 %v83
    %v120 = vunpack.c.l.b16 %v84
    %v121 = vunpack.c.l.b16 %v85
    %v122 = vunpack.c.l.b16 %v86
    %v123 = vunpack.c.l.b16 %v87
    %v124 = vunpack.c.l.b16 %v88
    %v125 = vunpack.c.l.b16 %v89
    %v126 = vunpack.c.l.b16 %v90
    %v127 = vunpack.c.l.b16 %v91
    %v128 = vunpack.c.l.b16 %v92
    %v129 = vunpack.c.l.b16 %v93
    %v130 = vunpack.c.l.b16 %v94
    %v131 = vunpack.c.l.b16 %v95
    %v132 = vpack.c.b16 %v117, %v116
    %v133 = vpack.c.b16 %v119, %v118
    %v134 = vpack.c.b16 %v121, %v120
    %v135 = vpack.c.b16 %v123, %v122
    %v136 = vpack.c.b16 %v125, %v124
    %v137 = vpack.c.b16 %v127, %v126
    %v138 = vpack.c.b16 %v129, %v128
    %v139 = vpack.c.b16 %v131, %v130
    %148 = vmatpush.bf16.msra.mxu0 %v139
    %149 = vmatpush.bf16.msra.mxu0 %v138
    %150 = vmatpush.bf16.msra.mxu0 %v137
    %151 = vmatpush.bf16.msra.mxu0 %v136
    %152 = vmatpush.bf16.msra.mxu0 %v135
    %153 = vmatpush.bf16.msra.mxu0 %v134
    %154 = vmatpush.bf16.msra.mxu0 %v133
    %155 = vmatpush.bf16.msra.mxu0 %v132
    %156 = vmatmul.bf16.gmra.mxu0 %v78
    %v157 = vpop.f32.mrf.mxu0
    %v158 = vadd.f32 %v98, %v157
    %v159 = vpop.f32.mrf.mxu0
    %160 = vdwg.mxu0
    %v161 = vmax.f32 %v158, 0.0
    %vm162 = vcmask 261120
    %163 = vst.msk [vmem:[#allocation6] sm:$0xff] %vm162, %v161
    %v164 = vpack.c.bf16 %v161, %v161
    %v165 = vld [vmem:[%s5] sm:$0xf]
    %v166 = vld [vmem:[%s5 + $0x4] sm:$0xf]
    %v167 = vld [vmem:[%s5 + $0x8] sm:$0xf]
    %v168 = vld [vmem:[%s5 + $0xc] sm:$0xf]
    %v169 = vld [vmem:[%s6] sm:$0x1]
    %v171 = vperm.slane %v169, 0
    %v177 = vunpack.c.l.b16 %v165
    %v178 = vunpack.c.l.b16 %v166
    %v179 = vunpack.c.l.b16 %v167
    %v180 = vunpack.c.l.b16 %v168
    %v181 = vpack.c.b16 %v178, %v177
    %v182 = vpack.c.b16 %v180, %v179
    %v186 = vsel %vm162, %v164, 0
    %188 = vmatpush.bf16.msra.mxu0 0
    %189 = vmatpush.bf16.msra.mxu0 0
    %190 = vmatpush.bf16.msra.mxu0 0
    %191 = vmatpush.bf16.msra.mxu0 0
    %192 = vmatpush.bf16.msra.mxu0 0
    %193 = vmatpush.bf16.msra.mxu0 0
    %194 = vmatpush.bf16.msra.mxu0 %v182
    %195 = vmatpush.bf16.msra.mxu0 %v181
    %196 = vmatmul.bf16.gmra.mxu0 %v186
    %v197 = vpop.f32.mrf.mxu0
    %v198 = vadd.f32 %v171, %v197
    %v199 = vpop.f32.mrf.mxu0
    %200 = vdwg.mxu0
    %v201 = vmax.f32 %v198, 0.0
    %202 = vst.msk [vmem:[#allocation2] sm:$0xff] %vm162, %v201
    // Predicated region
    $region30: #{tpu_custom_call.1} parent=1 // pred_check
      _
    $region31: #{tpu_custom_call.1} parent=1 // pred_check_branch
      %204 = sbr.rel (0) target = $region33
    $region32: #{tpu_custom_call.1} parent=1 // pred_region
      %206 = vsyncadd [#allocation3], 0
      %s208 = sshll.u32 [#allocation2], 4
      %s209 = int_to_ptr.vmem [resolvable:$true] %s208
      %s210 = sshll.u32 %s7, 4
      %s211 = int_to_ptr.hbm [resolvable:$true] %s210
      %213 = dma.vmem_to_hbm [thread:$0]  %s209, 128, %s211, [#allocation3]
    $region33: #{tpu_custom_call.1} parent=1 // pred_fallthru
      _
    // Predicated region
    $region34: #{tpu_custom_call.1} parent=1 // pred_check
      _
    $region35: #{tpu_custom_call.1} parent=1 // pred_check_branch
      %215 = sbr.rel (0) target = $region37
    $region36: #{tpu_custom_call.1} parent=1 // pred_region
      %217 = vsyncadd [#allocation5], 0
      %s219 = sshll.u32 [#allocation4], 4
      %s220 = int_to_ptr.vmem [resolvable:$true] %s219
      %s221 = sshll.u32 %s8, 4
      %s222 = int_to_ptr.hbm [resolvable:$true] %s221
      %224 = dma.vmem_to_hbm [thread:$0]  %s220, 64, %s222, [#allocation5]
    $region37: #{tpu_custom_call.1} parent=1 // pred_fallthru
      _
    // Predicated region
    $region38: #{tpu_custom_call.1} parent=1 // pred_check
      _
    $region39: #{tpu_custom_call.1} parent=1 // pred_check_branch
      %226 = sbr.rel (0) target = $region41
    $region40: #{tpu_custom_call.1} parent=1 // pred_region
      %228 = vsyncadd [#allocation5], 0
      %s230 = sshll.u32 [#allocation6], 4
      %s231 = int_to_ptr.vmem [resolvable:$true] %s230
      %s232 = sshll.u32 %s9, 4
      %s233 = int_to_ptr.hbm [resolvable:$true] %s232
      %235 = dma.vmem_to_hbm [thread:$0]  %s231, 128, %s233, [#allocation5]
    $region41: #{tpu_custom_call.1} parent=1 // pred_fallthru
      _
    // Predicated region
    $region42: #{tpu_custom_call.1} parent=1 // pred_check
      _
    $region43: #{tpu_custom_call.1} parent=1 // pred_check_branch
      %237 = sbr.rel (0) target = $region45
    $region44: #{tpu_custom_call.1} parent=1 // pred_region
      %239 = dma.done [#allocation3], 128
    $region45: #{tpu_custom_call.1} parent=1 // pred_fallthru
      _
    // Predicated region
    $region46: #{tpu_custom_call.1} parent=1 // pred_check
      _
    $region47: #{tpu_custom_call.1} parent=1 // pred_check_branch
      %241 = sbr.rel (0) target = $region49
    $region48: #{tpu_custom_call.1} parent=1 // pred_region
      %243 = dma.done [#allocation5], 64
    $region49: #{tpu_custom_call.1} parent=1 // pred_fallthru
      _
    // Predicated region
    $region50: #{tpu_custom_call.1} parent=1 // pred_check
      _
    $region51: #{tpu_custom_call.1} parent=1 // pred_check_branch
      %245 = sbr.rel (0) target = $region53
    $region52: #{tpu_custom_call.1} parent=1 // pred_region
      %247 = dma.done [#allocation5], 128
    $region53: #{tpu_custom_call.1} parent=1 // pred_fallthru
      _
    %248 = vsyncpa [#allocation3], 1
    %249 = vsyncpa [#allocation5], 1

</llo_original>
